<compile_context>
chip_gen: v7x
topology: tpu7x:2x2x1
jax: 0.10.0
libtpu: 0.0.40
codegen_flags: <defaults>
</compile_context>

<pallas_src>
import jax
import jax.numpy as jnp
from jax import lax
from jax.experimental import pallas as pl
from jax.experimental.pallas import tpu as pltpu

INIT_RANGE = 0.02
LN_EPS = 1e-12
NUM_CLASSES = 2
LANES = 128                         # lane-dense padded width for the logits slab
MATMUL_DTYPE = jnp.bfloat16         # MXU input dtype; accumulation stays f32

VMEM_LIMIT_BYTES = 56 * 1024 * 1024        # > v5e 16 MiB default scoped, <= v7x 64 MiB physical
RESIDENT_VMEM_BUDGET = 40 * 1024 * 1024    # conservative all-resident budget (fits v7x too)


def _gelu_exact(x):
    # BERT default activation: exact (erf-based) gelu, computed in f32.
    # (Switch to tanh gelu only if bundle analysis shows VALU saturation.)
    return 0.5 * x * (1.0 + lax.erf(x * 0.7071067811865475))


def _round_up(n, m):
    return ((n + m - 1) // m) * m


# ------------------------- resident (single-step) kernel -------------------------

def _resident_kernel(x_ref, pre_w_ref, pre_b_ref,
                     wi_ref, bi_ref, wo_ref, bo_ref,
                     g_ref, beta_ref,
                     post_w_ref, post_b_ref,
                     logits_ref):
    # pre_layer Linear
    h = (jnp.dot(x_ref[...].astype(MATMUL_DTYPE), pre_w_ref[...],
                 preferred_element_type=jnp.float32) + pre_b_ref[...])

    num_layers = wi_ref.shape[0]

    def layer(l, h):
        # intermediate Linear -> gelu -> output Linear -> residual -> LayerNorm
        # (dropout is identity in eval mode)
        inter = (jnp.dot(h.astype(MATMUL_DTYPE), wi_ref[l],
                         preferred_element_type=jnp.float32) + bi_ref[l])
        inter = _gelu_exact(inter)
        out = (jnp.dot(inter.astype(MATMUL_DTYPE), wo_ref[l],
                       preferred_element_type=jnp.float32) + bo_ref[l])
        out = out + h
        mean = jnp.mean(out, axis=-1, keepdims=True)
        var = jnp.mean((out - mean) ** 2, axis=-1, keepdims=True)
        return (out - mean) * lax.rsqrt(var + LN_EPS) * g_ref[l] + beta_ref[l]

    h = lax.fori_loop(0, num_layers, layer, h, unroll=True)

    # post_layer Linear into a lane-dense (B, 128) slab
    logits_ref[...] = (jnp.dot(h.astype(MATMUL_DTYPE), post_w_ref[...],
                               preferred_element_type=jnp.float32)
                       + post_b_ref[...]).astype(logits_ref.dtype)


# ------------------------- streamed (per-layer grid) kernel -------------------------

def _streamed_kernel(x_ref, pre_w_ref, pre_b_ref,
                     wi_ref, bi_ref, wo_ref, bo_ref,
                     g_ref, beta_ref,
                     post_w_ref, post_b_ref,
                     logits_ref, h_ref):
    l = pl.program_id(0)

    # prologue: pre_layer Linear (first grid step only)
    @pl.when(l == 0)
    def _():
        h_ref[...] = (
            jnp.dot(x_ref[...].astype(MATMUL_DTYPE), pre_w_ref[...],
                    preferred_element_type=jnp.float32) + pre_b_ref[...])

    # one MLP layer; wi/wo blocks are the current layer's streamed slice,
    # bi/bo/gamma/beta are resident full stacks indexed with l.
    h = h_ref[...]                                                # f32 [B, H]
    inter = (jnp.dot(h.astype(MATMUL_DTYPE), wi_ref[0],
                     preferred_element_type=jnp.float32) + bi_ref[l])
    inter = _gelu_exact(inter)
    out = (jnp.dot(inter.astype(MATMUL_DTYPE), wo_ref[0],
                   preferred_element_type=jnp.float32) + bo_ref[l])
    out = out + h                                                 # residual
    mean = jnp.mean(out, axis=-1, keepdims=True)
    var = jnp.mean((out - mean) ** 2, axis=-1, keepdims=True)
    h_new = (out - mean) * lax.rsqrt(var + LN_EPS) * g_ref[l] + beta_ref[l]
    h_ref[...] = h_new

    # epilogue: post_layer Linear into the lane-dense (B, 128) slab
    @pl.when(l == pl.num_programs(0) - 1)
    def _():
        logits_ref[...] = (
            jnp.dot(h_new.astype(MATMUL_DTYPE), post_w_ref[...],
                    preferred_element_type=jnp.float32)
            + post_b_ref[...]).astype(logits_ref.dtype)


# ------------------------- wrappers -------------------------

def _c2(l):
    return (0, 0)


def _c3(l):
    return (0, 0, 0)


def _resident_vmem_estimate(B, Din, H, I, L):
    bf16, f32 = 2, 4
    weights = (Din * H + L * 2 * H * I + H * LANES) * bf16
    vectors = (H + L * (I + 3 * H) + LANES) * f32
    acts = (B * Din + 2 * B * H + B * I + B * LANES) * f32
    return weights + vectors + acts


def _run_streamed(x, params, *, single_buffer):
    B, Din = x.shape
    L, H, I = params["wi"].shape

    def const_spec(shape):
        index_map = _c2 if len(shape) == 2 else _c3
        if single_buffer:
            # Constant-index blocks never change across the grid: single-buffer
            # them to halve their VMEM footprint.
            return pl.BlockSpec(shape, index_map, pipeline_mode=pl.Buffered(1))
        return pl.BlockSpec(shape, index_map)

    grid_spec = pltpu.PrefetchScalarGridSpec(
        num_scalar_prefetch=0,
        grid=(L,),
        in_specs=[
            const_spec((B, Din)),                             # x          (resident)
            const_spec((Din, H)),                             # pre_w      (resident)
            const_spec((1, H)),                               # pre_b      (resident)
            pl.BlockSpec((1, H, I), lambda l: (l, 0, 0)),     # wi[l]      (streamed, 2-buf)
            const_spec((L, 1, I)),                            # bi stack   (resident)
            pl.BlockSpec((1, I, H), lambda l: (l, 0, 0)),     # wo[l]      (streamed, 2-buf)
            const_spec((L, 1, H)),                            # bo stack   (resident)
            const_spec((L, 1, H)),                            # ln_gamma   (resident)
            const_spec((L, 1, H)),                            # ln_beta    (resident)
            const_spec((H, LANES)),                           # post_w     (resident, padded)
            const_spec((1, LANES)),                           # post_b     (resident, padded)
        ],
        out_specs=pl.BlockSpec((B, LANES), lambda l: (0, 0)), # lane-dense logits slab
        scratch_shapes=[pltpu.VMEM((B, H), jnp.float32)],     # h resident across layers
    )

    return pl.pallas_call(
        _streamed_kernel,
        out_shape=jax.ShapeDtypeStruct((B, LANES), jnp.float32),
        grid_spec=grid_spec,
        compiler_params=pltpu.CompilerParams(
            dimension_semantics=("arbitrary",),   # sequential dependence through h
            vmem_limit_bytes=VMEM_LIMIT_BYTES,
        ),
    )(x, params["pre_w"], params["pre_b"],
      params["wi"], params["bi"], params["wo"], params["bo"],
      params["ln_g"], params["ln_b"],
      params["post_w"], params["post_b"])


def _run_resident(x, params):
    B, _ = x.shape
    # No grid, no BlockSpecs: every operand is a whole-array VMEM block;
    # layers are an unrolled in-kernel loop.
    return pl.pallas_call(
        _resident_kernel,
        out_shape=jax.ShapeDtypeStruct((B, LANES), jnp.float32),
        compiler_params=pltpu.CompilerParams(vmem_limit_bytes=VMEM_LIMIT_BYTES),
    )(x, params["pre_w"], params["pre_b"],
      params["wi"], params["bi"], params["wo"], params["bo"],
      params["ln_g"], params["ln_b"],
      params["post_w"], params["post_b"])


def binary_classifier_forward(x, params, *, force_streamed=False):
    B0, Din = x.shape
    L, H, I = params["wi"].shape
    assert L >= 1, "fused kernel expects at least one MLP layer"

    # Sublane-align the batch (callers should feed >=128 rows for MXU utilization).
    B = max(_round_up(B0, 8), 8)
    if B != B0:
        x = jnp.pad(x, ((0, B - B0), (0, 0)))

    use_resident = (not force_streamed) and (
        _resident_vmem_estimate(B, Din, H, I, L) <= RESIDENT_VMEM_BUDGET)

    if use_resident:
        logits_pad = _run_resident(x, params)
    else:
        try:
            logits_pad = _run_streamed(x, params, single_buffer=True)
            jax.block_until_ready(logits_pad)
        except Exception:
            # Buffered(1) single-buffering is a pure VMEM optimization; fall back
            # to default double-buffering if this JAX build rejects it.
            logits_pad = _run_streamed(x, params, single_buffer=False)

    return logits_pad[:B0, :NUM_CLASSES]


# ------------------------- pure-JAX reference (same math/dtype policy) -------------------------

def reference_forward(x, params):
    def mm(a, b):
        return jnp.dot(a.astype(MATMUL_DTYPE), b, preferred_element_type=jnp.float32)

    h = mm(x, params["pre_w"]) + params["pre_b"]
    L = params["wi"].shape[0]
    for l in range(L):
        inter = _gelu_exact(mm(h, params["wi"][l]) + params["bi"][l])
        out = mm(inter, params["wo"][l]) + params["bo"][l] + h
        mean = jnp.mean(out, axis=-1, keepdims=True)
        var = jnp.mean((out - mean) ** 2, axis=-1, keepdims=True)
        h = (out - mean) * lax.rsqrt(var + LN_EPS) * params["ln_g"][l] + params["ln_b"][l]
    logits = mm(h, params["post_w"]) + params["post_b"]
    return logits[:, :NUM_CLASSES]


# ------------------------- param init (init_bert_weights semantics) -------------------------

def init_params(key, input_size, hidden_size, intermediate_size, num_layers):
    # Linear weights ~ N(0, 0.02), biases = 0; LayerNorm gamma = 1, beta = 0.
    H, I, L = hidden_size, intermediate_size, num_layers
    keys = jax.random.split(key, 2 + 2 * L)

    def w(k, shape):
        return (INIT_RANGE * jax.random.normal(k, shape, jnp.float32)).astype(MATMUL_DTYPE)

    # post_layer weight zero-padded to 128 output columns (lane-dense epilogue store);
    # padded bias columns are zero so the extra logits are inert and sliced off.
    post_w = jnp.zeros((H, LANES), jnp.float32)
    post_w = post_w.at[:, :NUM_CLASSES].set(
        INIT_RANGE * jax.random.normal(keys[1], (H, NUM_CLASSES), jnp.float32))

    return {
        "pre_w": w(keys[0], (input_size, H)),
        "pre_b": jnp.zeros((1, H), jnp.float32),
        "wi": jnp.stack([w(keys[2 + 2 * i], (H, I)) for i in range(L)]),
        "bi": jnp.zeros((L, 1, I), jnp.float32),
        "wo": jnp.stack([w(keys[3 + 2 * i], (I, H)) for i in range(L)]),
        "bo": jnp.zeros((L, 1, H), jnp.float32),
        "ln_g": jnp.ones((L, 1, H), jnp.float32),
        "ln_b": jnp.zeros((L, 1, H), jnp.float32),
        "post_w": post_w.astype(MATMUL_DTYPE),
        "post_b": jnp.zeros((1, LANES), jnp.float32),
    }


if __name__ == "__main__":
    # Small shapes consistent with the module: [batch, input_size] activations.
    batch = 8
    input_size = 64
    hidden_size = 32
    intermediate_size = 128   # 4 * hidden_size (BERT convention)
    num_layers = 2

    key = jax.random.PRNGKey(0)
    k_x, k_p = jax.random.split(key)
    x = jax.random.normal(k_x, (batch, input_size), jnp.float32)
    params = init_params(k_p, input_size, hidden_size, intermediate_size, num_layers)

    # Resident (all-weights-in-VMEM, single grid step) path — auto-selected for small models.
    logits_resident = binary_classifier_forward(x, params)
    # Streamed (one layer per grid step) path — exercised explicitly for coverage.
    logits_streamed = binary_classifier_forward(x, params, force_streamed=True)
    jax.block_until_ready((logits_resident, logits_streamed))

    assert logits_resident.shape == (batch, NUM_CLASSES), logits_resident.shape
    assert logits_streamed.shape == (batch, NUM_CLASSES), logits_streamed.shape
    assert bool(jnp.all(jnp.isfinite(logits_resident)))
    assert bool(jnp.all(jnp.isfinite(logits_streamed)))
    assert bool(jnp.allclose(logits_resident, logits_streamed, atol=1e-5, rtol=1e-5))

    ref = reference_forward(x, params)
    assert bool(jnp.allclose(logits_resident, ref, atol=1e-2, rtol=1e-2))
    print("KERNEL_OK")
</pallas_src>

<mosaic_0001>
module attributes {stable_mosaic.version = 11 : i64} {
  func.func @_resident_kernel(%arg0: memref<8x64xf32, #tpu.memory_space<vmem>>, %arg1: memref<64x32xbf16, #tpu.memory_space<vmem>>, %arg2: memref<1x32xf32, #tpu.memory_space<vmem>>, %arg3: memref<2x32x128xbf16, #tpu.memory_space<vmem>>, %arg4: memref<2x1x128xf32, #tpu.memory_space<vmem>>, %arg5: memref<2x128x32xbf16, #tpu.memory_space<vmem>>, %arg6: memref<2x1x32xf32, #tpu.memory_space<vmem>>, %arg7: memref<2x1x32xf32, #tpu.memory_space<vmem>>, %arg8: memref<2x1x32xf32, #tpu.memory_space<vmem>>, %arg9: memref<32x128xbf16, #tpu.memory_space<vmem>>, %arg10: memref<1x128xf32, #tpu.memory_space<vmem>>, %arg11: memref<8x128xf32, #tpu.memory_space<vmem>>) attributes {dimension_semantics = [], scalar_prefetch = 0 : i64, scratch_operands = 0 : i64, tpu.core_type = #tpu.core_type<tc>} {
    %c0 = arith.constant 0 : index
    %c0_0 = arith.constant 0 : index
    %0 = vector.load %arg0[%c0, %c0_0] : memref<8x64xf32, #tpu.memory_space<vmem>>, vector<8x64xf32>
    %1 = arith.truncf %0 : vector<8x64xf32> to vector<8x64xbf16>
    %c0_1 = arith.constant 0 : index
    %c0_2 = arith.constant 0 : index
    %2 = vector.load %arg1[%c0_1, %c0_2] : memref<64x32xbf16, #tpu.memory_space<vmem>>, vector<64x32xbf16>
    %cst = arith.constant dense<0.000000e+00> : vector<8x32xf32>
    %3 = tpu.matmul %1, %2, %cst {dimension_numbers = #tpu.dot_dimension_numbers<[1], [0], [0], [1], [0, 0, 1, 1], [], []>} : vector<8x64xbf16>, vector<64x32xbf16>, vector<8x32xf32> -> vector<8x32xf32>
    %c0_3 = arith.constant 0 : index
    %c0_4 = arith.constant 0 : index
    %4 = vector.load %arg2[%c0_3, %c0_4] : memref<1x32xf32, #tpu.memory_space<vmem>>, vector<1x32xf32>
    %5 = vector.broadcast %4 : vector<1x32xf32> to vector<8x32xf32>
    %6 = arith.addf %3, %5 : vector<8x32xf32>
    %c0_i32 = arith.constant 0 : i32
    %7 = arith.truncf %6 : vector<8x32xf32> to vector<8x32xbf16>
    %8 = arith.index_cast %c0_i32 : i32 to index
    %c0_5 = arith.constant 0 : index
    %c0_6 = arith.constant 0 : index
    %9 = vector.load %arg3[%8, %c0_5, %c0_6] : memref<2x32x128xbf16, #tpu.memory_space<vmem>>, vector<1x32x128xbf16>
    %10 = vector.shape_cast %9 : vector<1x32x128xbf16> to vector<32x128xbf16>
    %cst_7 = arith.constant dense<0.000000e+00> : vector<8x128xf32>
    %11 = tpu.matmul %7, %10, %cst_7 {dimension_numbers = #tpu.dot_dimension_numbers<[1], [0], [0], [1], [0, 0, 1, 1], [], []>} : vector<8x32xbf16>, vector<32x128xbf16>, vector<8x128xf32> -> vector<8x128xf32>
    %12 = arith.index_cast %c0_i32 : i32 to index
    %c0_8 = arith.constant 0 : index
    %c0_9 = arith.constant 0 : index
    %13 = vector.load %arg4[%12, %c0_8, %c0_9] : memref<2x1x128xf32, #tpu.memory_space<vmem>>, vector<1x1x128xf32>
    %14 = vector.shape_cast %13 : vector<1x1x128xf32> to vector<1x128xf32>
    %15 = vector.broadcast %14 : vector<1x128xf32> to vector<8x128xf32>
    %16 = arith.addf %11, %15 : vector<8x128xf32>
    %cst_10 = arith.constant 5.000000e-01 : f32
    %17 = vector.broadcast %cst_10 : f32 to vector<8x128xf32>
    %18 = arith.mulf %17, %16 : vector<8x128xf32>
    %cst_11 = arith.constant 0.707106769 : f32
    %19 = vector.broadcast %cst_11 : f32 to vector<8x128xf32>
    %20 = arith.mulf %16, %19 : vector<8x128xf32>
    %21 = math.erf %20 : vector<8x128xf32>
    %cst_12 = arith.constant 1.000000e+00 : f32
    %22 = vector.broadcast %cst_12 : f32 to vector<8x128xf32>
    %23 = arith.addf %22, %21 : vector<8x128xf32>
    %24 = arith.mulf %18, %23 : vector<8x128xf32>
    %25 = arith.truncf %24 : vector<8x128xf32> to vector<8x128xbf16>
    %26 = arith.index_cast %c0_i32 : i32 to index
    %c0_13 = arith.constant 0 : index
    %c0_14 = arith.constant 0 : index
    %27 = vector.load %arg5[%26, %c0_13, %c0_14] : memref<2x128x32xbf16, #tpu.memory_space<vmem>>, vector<1x128x32xbf16>
    %28 = vector.shape_cast %27 : vector<1x128x32xbf16> to vector<128x32xbf16>
    %cst_15 = arith.constant dense<0.000000e+00> : vector<8x32xf32>
    %29 = tpu.matmul %25, %28, %cst_15 {dimension_numbers = #tpu.dot_dimension_numbers<[1], [0], [0], [1], [0, 0, 1, 1], [], []>} : vector<8x128xbf16>, vector<128x32xbf16>, vector<8x32xf32> -> vector<8x32xf32>
    %30 = arith.index_cast %c0_i32 : i32 to index
    %c0_16 = arith.constant 0 : index
    %c0_17 = arith.constant 0 : index
    %31 = vector.load %arg6[%30, %c0_16, %c0_17] : memref<2x1x32xf32, #tpu.memory_space<vmem>>, vector<1x1x32xf32>
    %32 = vector.shape_cast %31 : vector<1x1x32xf32> to vector<1x32xf32>
    %33 = vector.broadcast %32 : vector<1x32xf32> to vector<8x32xf32>
    %34 = arith.addf %29, %33 : vector<8x32xf32>
    %35 = arith.addf %34, %6 : vector<8x32xf32>
    %cst_18 = arith.constant dense<0.000000e+00> : vector<8xf32>
    %36 = vector.multi_reduction <add>, %35, %cst_18 [1] : vector<8x32xf32> to vector<8xf32>
    %37 = vector.shape_cast %36 : vector<8xf32> to vector<8x1xf32>
    %cst_19 = arith.constant 3.200000e+01 : f32
    %38 = vector.broadcast %cst_19 : f32 to vector<8x1xf32>
    %39 = arith.divf %37, %38 : vector<8x1xf32>
    %40 = vector.broadcast %39 : vector<8x1xf32> to vector<8x32xf32>
    %41 = arith.subf %35, %40 : vector<8x32xf32>
    %42 = arith.mulf %41, %41 : vector<8x32xf32>
    %cst_20 = arith.constant dense<0.000000e+00> : vector<8xf32>
    %43 = vector.multi_reduction <add>, %42, %cst_20 [1] : vector<8x32xf32> to vector<8xf32>
    %44 = vector.shape_cast %43 : vector<8xf32> to vector<8x1xf32>
    %cst_21 = arith.constant 3.200000e+01 : f32
    %45 = vector.broadcast %cst_21 : f32 to vector<8x1xf32>
    %46 = arith.divf %44, %45 : vector<8x1xf32>
    %47 = vector.broadcast %39 : vector<8x1xf32> to vector<8x32xf32>
    %48 = arith.subf %35, %47 : vector<8x32xf32>
    %cst_22 = arith.constant 9.99999996E-13 : f32
    %49 = vector.broadcast %cst_22 : f32 to vector<8x1xf32>
    %50 = arith.addf %46, %49 : vector<8x1xf32>
    %51 = math.rsqrt %50 : vector<8x1xf32>
    %52 = vector.broadcast %51 : vector<8x1xf32> to vector<8x32xf32>
    %53 = arith.mulf %48, %52 : vector<8x32xf32>
    %54 = arith.index_cast %c0_i32 : i32 to index
    %c0_23 = arith.constant 0 : index
    %c0_24 = arith.constant 0 : index
    %55 = vector.load %arg7[%54, %c0_23, %c0_24] : memref<2x1x32xf32, #tpu.memory_space<vmem>>, vector<1x1x32xf32>
    %56 = vector.shape_cast %55 : vector<1x1x32xf32> to vector<1x32xf32>
    %57 = vector.broadcast %56 : vector<1x32xf32> to vector<8x32xf32>
    %58 = arith.mulf %53, %57 : vector<8x32xf32>
    %59 = arith.index_cast %c0_i32 : i32 to index
    %c0_25 = arith.constant 0 : index
    %c0_26 = arith.constant 0 : index
    %60 = vector.load %arg8[%59, %c0_25, %c0_26] : memref<2x1x32xf32, #tpu.memory_space<vmem>>, vector<1x1x32xf32>
    %61 = vector.shape_cast %60 : vector<1x1x32xf32> to vector<1x32xf32>
    %62 = vector.broadcast %61 : vector<1x32xf32> to vector<8x32xf32>
    %63 = arith.addf %58, %62 : vector<8x32xf32>
    %c1_i32 = arith.constant 1 : i32
    %64 = arith.truncf %63 : vector<8x32xf32> to vector<8x32xbf16>
    %65 = arith.index_cast %c1_i32 : i32 to index
    %c0_27 = arith.constant 0 : index
    %c0_28 = arith.constant 0 : index
    %66 = vector.load %arg3[%65, %c0_27, %c0_28] : memref<2x32x128xbf16, #tpu.memory_space<vmem>>, vector<1x32x128xbf16>
    %67 = vector.shape_cast %66 : vector<1x32x128xbf16> to vector<32x128xbf16>
    %cst_29 = arith.constant dense<0.000000e+00> : vector<8x128xf32>
    %68 = tpu.matmul %64, %67, %cst_29 {dimension_numbers = #tpu.dot_dimension_numbers<[1], [0], [0], [1], [0, 0, 1, 1], [], []>} : vector<8x32xbf16>, vector<32x128xbf16>, vector<8x128xf32> -> vector<8x128xf32>
    %69 = arith.index_cast %c1_i32 : i32 to index
    %c0_30 = arith.constant 0 : index
    %c0_31 = arith.constant 0 : index
    %70 = vector.load %arg4[%69, %c0_30, %c0_31] : memref<2x1x128xf32, #tpu.memory_space<vmem>>, vector<1x1x128xf32>
    %71 = vector.shape_cast %70 : vector<1x1x128xf32> to vector<1x128xf32>
    %72 = vector.broadcast %71 : vector<1x128xf32> to vector<8x128xf32>
    %73 = arith.addf %68, %72 : vector<8x128xf32>
    %cst_32 = arith.constant 5.000000e-01 : f32
    %74 = vector.broadcast %cst_32 : f32 to vector<8x128xf32>
    %75 = arith.mulf %74, %73 : vector<8x128xf32>
    %cst_33 = arith.constant 0.707106769 : f32
    %76 = vector.broadcast %cst_33 : f32 to vector<8x128xf32>
    %77 = arith.mulf %73, %76 : vector<8x128xf32>
    %78 = math.erf %77 : vector<8x128xf32>
    %cst_34 = arith.constant 1.000000e+00 : f32
    %79 = vector.broadcast %cst_34 : f32 to vector<8x128xf32>
    %80 = arith.addf %79, %78 : vector<8x128xf32>
    %81 = arith.mulf %75, %80 : vector<8x128xf32>
    %82 = arith.truncf %81 : vector<8x128xf32> to vector<8x128xbf16>
    %83 = arith.index_cast %c1_i32 : i32 to index
    %c0_35 = arith.constant 0 : index
    %c0_36 = arith.constant 0 : index
    %84 = vector.load %arg5[%83, %c0_35, %c0_36] : memref<2x128x32xbf16, #tpu.memory_space<vmem>>, vector<1x128x32xbf16>
    %85 = vector.shape_cast %84 : vector<1x128x32xbf16> to vector<128x32xbf16>
    %cst_37 = arith.constant dense<0.000000e+00> : vector<8x32xf32>
    %86 = tpu.matmul %82, %85, %cst_37 {dimension_numbers = #tpu.dot_dimension_numbers<[1], [0], [0], [1], [0, 0, 1, 1], [], []>} : vector<8x128xbf16>, vector<128x32xbf16>, vector<8x32xf32> -> vector<8x32xf32>
    %87 = arith.index_cast %c1_i32 : i32 to index
    %c0_38 = arith.constant 0 : index
    %c0_39 = arith.constant 0 : index
    %88 = vector.load %arg6[%87, %c0_38, %c0_39] : memref<2x1x32xf32, #tpu.memory_space<vmem>>, vector<1x1x32xf32>
    %89 = vector.shape_cast %88 : vector<1x1x32xf32> to vector<1x32xf32>
    %90 = vector.broadcast %89 : vector<1x32xf32> to vector<8x32xf32>
    %91 = arith.addf %86, %90 : vector<8x32xf32>
    %92 = arith.addf %91, %63 : vector<8x32xf32>
    %cst_40 = arith.constant dense<0.000000e+00> : vector<8xf32>
    %93 = vector.multi_reduction <add>, %92, %cst_40 [1] : vector<8x32xf32> to vector<8xf32>
    %94 = vector.shape_cast %93 : vector<8xf32> to vector<8x1xf32>
    %cst_41 = arith.constant 3.200000e+01 : f32
    %95 = vector.broadcast %cst_41 : f32 to vector<8x1xf32>
    %96 = arith.divf %94, %95 : vector<8x1xf32>
    %97 = vector.broadcast %96 : vector<8x1xf32> to vector<8x32xf32>
    %98 = arith.subf %92, %97 : vector<8x32xf32>
    %99 = arith.mulf %98, %98 : vector<8x32xf32>
    %cst_42 = arith.constant dense<0.000000e+00> : vector<8xf32>
    %100 = vector.multi_reduction <add>, %99, %cst_42 [1] : vector<8x32xf32> to vector<8xf32>
    %101 = vector.shape_cast %100 : vector<8xf32> to vector<8x1xf32>
    %cst_43 = arith.constant 3.200000e+01 : f32
    %102 = vector.broadcast %cst_43 : f32 to vector<8x1xf32>
    %103 = arith.divf %101, %102 : vector<8x1xf32>
    %104 = vector.broadcast %96 : vector<8x1xf32> to vector<8x32xf32>
    %105 = arith.subf %92, %104 : vector<8x32xf32>
    %cst_44 = arith.constant 9.99999996E-13 : f32
    %106 = vector.broadcast %cst_44 : f32 to vector<8x1xf32>
    %107 = arith.addf %103, %106 : vector<8x1xf32>
    %108 = math.rsqrt %107 : vector<8x1xf32>
    %109 = vector.broadcast %108 : vector<8x1xf32> to vector<8x32xf32>
    %110 = arith.mulf %105, %109 : vector<8x32xf32>
    %111 = arith.index_cast %c1_i32 : i32 to index
    %c0_45 = arith.constant 0 : index
    %c0_46 = arith.constant 0 : index
    %112 = vector.load %arg7[%111, %c0_45, %c0_46] : memref<2x1x32xf32, #tpu.memory_space<vmem>>, vector<1x1x32xf32>
    %113 = vector.shape_cast %112 : vector<1x1x32xf32> to vector<1x32xf32>
    %114 = vector.broadcast %113 : vector<1x32xf32> to vector<8x32xf32>
    %115 = arith.mulf %110, %114 : vector<8x32xf32>
    %116 = arith.index_cast %c1_i32 : i32 to index
    %c0_47 = arith.constant 0 : index
    %c0_48 = arith.constant 0 : index
    %117 = vector.load %arg8[%116, %c0_47, %c0_48] : memref<2x1x32xf32, #tpu.memory_space<vmem>>, vector<1x1x32xf32>
    %118 = vector.shape_cast %117 : vector<1x1x32xf32> to vector<1x32xf32>
    %119 = vector.broadcast %118 : vector<1x32xf32> to vector<8x32xf32>
    %120 = arith.addf %115, %119 : vector<8x32xf32>
    %c2_i32 = arith.constant 2 : i32
    %121 = arith.truncf %120 : vector<8x32xf32> to vector<8x32xbf16>
    %c0_49 = arith.constant 0 : index
    %c0_50 = arith.constant 0 : index
    %122 = vector.load %arg9[%c0_49, %c0_50] : memref<32x128xbf16, #tpu.memory_space<vmem>>, vector<32x128xbf16>
    %cst_51 = arith.constant dense<0.000000e+00> : vector<8x128xf32>
    %123 = tpu.matmul %121, %122, %cst_51 {dimension_numbers = #tpu.dot_dimension_numbers<[1], [0], [0], [1], [0, 0, 1, 1], [], []>} : vector<8x32xbf16>, vector<32x128xbf16>, vector<8x128xf32> -> vector<8x128xf32>
    %c0_52 = arith.constant 0 : index
    %c0_53 = arith.constant 0 : index
    %124 = vector.load %arg10[%c0_52, %c0_53] : memref<1x128xf32, #tpu.memory_space<vmem>>, vector<1x128xf32>
    %125 = vector.broadcast %124 : vector<1x128xf32> to vector<8x128xf32>
    %126 = arith.addf %123, %125 : vector<8x128xf32>
    %c0_54 = arith.constant 0 : index
    %c0_55 = arith.constant 0 : index
    %127 = vector.load %arg11[%c0_54, %c0_55] : memref<8x128xf32, #tpu.memory_space<vmem>>, vector<8x128xf32>
    tpu.vector_store %arg11[%c0_54, %c0_55], %126 {strides = array<i32>} : memref<8x128xf32, #tpu.memory_space<vmem>>, vector<8x128xf32>,
    return
  }
}

</mosaic_0001>

<llo_original>
// kernel: tpu_custom_call.1
$region0: #{tpu_custom_call.1}
  #allocation0 [shape = 'u32[]', space=smem, size = 0x4, offset = 0x4, fixed_abs, tag = 'smem constant byte address 0x4 - core index']
  #allocation1 [shape = 'u32[144,128]{1,0:T(1,128)}', space=vmem, size = 0x12000, scoped, tag = 'internal scratch']
  %s0 = inlined_call_operand.vmem [shape: f32[8,64], index: 0, kind: input, shape index: {}]
  %s1 = inlined_call_operand.vmem [shape: bf16[64,32], index: 1, kind: input, shape index: {}]
  %s2 = inlined_call_operand.vmem [shape: f32[1,32], index: 2, kind: input, shape index: {}]
  %s3 = inlined_call_operand.vmem [shape: bf16[2,32,128], index: 3, kind: input, shape index: {}]
  %s4 = inlined_call_operand.vmem [shape: f32[2,1,128], index: 4, kind: input, shape index: {}]
  %s5 = inlined_call_operand.vmem [shape: bf16[2,128,32], index: 5, kind: input, shape index: {}]
  %s6 = inlined_call_operand.vmem [shape: f32[2,1,32], index: 6, kind: input, shape index: {}]
  %s7 = inlined_call_operand.vmem [shape: f32[2,1,32], index: 7, kind: input, shape index: {}]
  %s8 = inlined_call_operand.vmem [shape: f32[2,1,32], index: 8, kind: input, shape index: {}]
  %s9 = inlined_call_operand.vmem [shape: bf16[32,128], index: 9, kind: input, shape index: {}]
  %s10 = inlined_call_operand.vmem [shape: f32[1,128], index: 10, kind: input, shape index: {}]
  %s11 = inlined_call_operand.hbm [shape: f32[8,128], index: 11, kind: output, shape index: {}]
  %s12 = sld [smem:[#allocation0]]
  $region54: #{tpu_custom_call.1} parent=0
    _
  %s14 = ssub.s32 1, %s12
  %s15 = scalar_select 0, %s14, %s12
  $region1: #{tpu_custom_call.1} parent=0
    #allocation2 [shape = 'u8[4096]{0}', space=vmem, size = 0x1000, scoped, tag = 'output window, operand 0, single buffered']
    #allocation3 [shape = 's32[1]{0}', space=sflag, size = 0x4, scoped, tag = 'scoped memory for tpu_custom_call.1']
    %16 = vsyncpa [#allocation3], 0
    // Predicated region
    $region2: #{tpu_custom_call.1} parent=1 // pred_check
      _
    $region3: #{tpu_custom_call.1} parent=1 // pred_check_branch
      %18 = sbr.rel (0) target = $region5
    $region4: #{tpu_custom_call.1} parent=1 // pred_region
      _
    $region5: #{tpu_custom_call.1} parent=1 // pred_fallthru
      _
    // Predicated region
    $region6: #{tpu_custom_call.1} parent=1 // pred_check
      _
    $region7: #{tpu_custom_call.1} parent=1 // pred_check_branch
      %20 = sbr.rel (0) target = $region9
    $region8: #{tpu_custom_call.1} parent=1 // pred_region
      _
    $region9: #{tpu_custom_call.1} parent=1 // pred_fallthru
      _
    // Predicated region
    $region10: #{tpu_custom_call.1} parent=1 // pred_check
      _
    $region11: #{tpu_custom_call.1} parent=1 // pred_check_branch
      %22 = sbr.rel (0) target = $region13
    $region12: #{tpu_custom_call.1} parent=1 // pred_region
      _
    $region13: #{tpu_custom_call.1} parent=1 // pred_fallthru
      _
    // Predicated region
    $region14: #{tpu_custom_call.1} parent=1 // pred_check
      _
    $region15: #{tpu_custom_call.1} parent=1 // pred_check_branch
      %24 = sbr.rel (0) target = $region17
    $region16: #{tpu_custom_call.1} parent=1 // pred_region
      _
    $region17: #{tpu_custom_call.1} parent=1 // pred_fallthru
      _
    // Predicated region
    $region18: #{tpu_custom_call.1} parent=1 // pred_check
      _
    $region19: #{tpu_custom_call.1} parent=1 // pred_check_branch
      %26 = sbr.rel (0) target = $region21
    $region20: #{tpu_custom_call.1} parent=1 // pred_region
      _
    $region21: #{tpu_custom_call.1} parent=1 // pred_fallthru
      _
    // Predicated region
    $region22: #{tpu_custom_call.1} parent=1 // pred_check
      _
    $region23: #{tpu_custom_call.1} parent=1 // pred_check_branch
      %28 = sbr.rel (0) target = $region25
    $region24: #{tpu_custom_call.1} parent=1 // pred_region
      _
    $region25: #{tpu_custom_call.1} parent=1 // pred_fallthru
      _
    // Predicated region
    $region26: #{tpu_custom_call.1} parent=1 // pred_check
      _
    $region27: #{tpu_custom_call.1} parent=1 // pred_check_branch
      %30 = sbr.rel (0) target = $region29
    $region28: #{tpu_custom_call.1} parent=1 // pred_region
      _
    $region29: #{tpu_custom_call.1} parent=1 // pred_fallthru
      _
    // Predicated region
    $region30: #{tpu_custom_call.1} parent=1 // pred_check
      _
    $region31: #{tpu_custom_call.1} parent=1 // pred_check_branch
      %32 = sbr.rel (0) target = $region33
    $region32: #{tpu_custom_call.1} parent=1 // pred_region
      _
    $region33: #{tpu_custom_call.1} parent=1 // pred_fallthru
      _
    // Predicated region
    $region34: #{tpu_custom_call.1} parent=1 // pred_check
      _
    $region35: #{tpu_custom_call.1} parent=1 // pred_check_branch
      %34 = sbr.rel (0) target = $region37
    $region36: #{tpu_custom_call.1} parent=1 // pred_region
      _
    $region37: #{tpu_custom_call.1} parent=1 // pred_fallthru
      _
    // Predicated region
    $region38: #{tpu_custom_call.1} parent=1 // pred_check
      _
    $region39: #{tpu_custom_call.1} parent=1 // pred_check_branch
      %36 = sbr.rel (0) target = $region41
    $region40: #{tpu_custom_call.1} parent=1 // pred_region
      _
    $region41: #{tpu_custom_call.1} parent=1 // pred_fallthru
      _
    // Predicated region
    $region42: #{tpu_custom_call.1} parent=1 // pred_check
      _
    $region43: #{tpu_custom_call.1} parent=1 // pred_check_branch
      %38 = sbr.rel (0) target = $region45
    $region44: #{tpu_custom_call.1} parent=1 // pred_region
      _
    $region45: #{tpu_custom_call.1} parent=1 // pred_fallthru
      _
    %v40 = vld [vmem:[%s0] sm:$0xff]
    %v41 = vpack.c.bf16 %v40, %v40
    %v42 = vld [vmem:[%s1] sm:$0xf]
    %v43 = vld [vmem:[%s1 + $0x4] sm:$0xf]
    %v44 = vld [vmem:[%s1 + $0x8] sm:$0xf]
    %v45 = vld [vmem:[%s1 + $0xc] sm:$0xf]
    %v46 = vld [vmem:[%s1 + $0x10] sm:$0xf]
    %v47 = vld [vmem:[%s1 + $0x14] sm:$0xf]
    %v48 = vld [vmem:[%s1 + $0x18] sm:$0xf]
    %v49 = vld [vmem:[%s1 + $0x1c] sm:$0xf]
    %v50 = vld [vmem:[%s2] sm:$0x1]
    %v52 = vlaneseq
    %v53 = vshrl.u32 %v52, 7
    %v54 = vsub.s32 0, %v53
    %v55 = vrot.slane %v50, %v54
    %v65 = vunpack.c.l.b16 %v42
    %v66 = vunpack.c.l.b16 %v43
    %v67 = vunpack.c.l.b16 %v44
    %v68 = vunpack.c.l.b16 %v45
    %v69 = vunpack.c.l.b16 %v46
    %v70 = vunpack.c.l.b16 %v47
    %v71 = vunpack.c.l.b16 %v48
    %v72 = vunpack.c.l.b16 %v49
    %v73 = vpack.c.b16 %v66, %v65
    %v74 = vpack.c.b16 %v68, %v67
    %v75 = vpack.c.b16 %v70, %v69
    %v76 = vpack.c.b16 %v72, %v71
    %vm81 = vcmask 523264
    %v83 = vsel %vm81, %v41, 0
    %85 = vmatprep.subr.bf16.mxu0 0
    %86 = vmatpush1.bf16.msra.mxu0 %v73
    %87 = vmatprep.subr.bf16.mxu0 0
    %88 = vmatpush1.bf16.msra.mxu0 %v74
    %89 = vmatprep.subr.bf16.mxu0 0
    %90 = vmatpush1.bf16.msra.mxu0 %v75
    %91 = vmatprep.subr.bf16.mxu0 0
    %92 = vmatpush1.bf16.msra.mxu0 %v76
    %93 = vmatprep.subr.bf16.mxu0 0
    %94 = vmatpush1.bf16.msra.mxu0 0
    %95 = vmatprep.subr.bf16.mxu0 0
    %96 = vmatpush1.bf16.msra.mxu0 0
    %97 = vmatprep.subr.bf16.mxu0 0
    %98 = vmatpush1.bf16.msra.mxu0 0
    %99 = vmatprep.subr.bf16.mxu0 0
    %100 = vmatpush1.bf16.msra.mxu0 0
    %101 = vmatprep.subr.bf16.mxu0 0
    %102 = vmatpush1.bf16.msra.mxu0 0
    %103 = vmatprep.subr.bf16.mxu0 0
    %104 = vmatpush1.bf16.msra.mxu0 0
    %105 = vmatprep.subr.bf16.mxu0 0
    %106 = vmatpush1.bf16.msra.mxu0 0
    %107 = vmatprep.subr.bf16.mxu0 0
    %108 = vmatpush1.bf16.msra.mxu0 0
    %109 = vmatprep.subr.bf16.mxu0 0
    %110 = vmatpush1.bf16.msra.mxu0 0
    %111 = vmatprep.subr.bf16.mxu0 0
    %112 = vmatpush1.bf16.msra.mxu0 0
    %113 = vmatprep.subr.bf16.mxu0 0
    %114 = vmatpush1.bf16.msra.mxu0 0
    %115 = vmatprep.subr.bf16.mxu0 0
    %116 = vmatpush1.bf16.msra.mxu0 0
    %117 = vmatprep.mubr.bf16.mxu0 0
    %118 = vmatmul.mubr.bf16.gmra.mrb[0].mxu0 %v83
    %v119 = vpop.f32.mrb[0].mxu0
    %v120 = vadd.f32 %v55, %v119
    %v121 = vpop.f32.mrb[0].mxu0
    %v122 = vpop.f32.mrb[0].mxu0
    %v123 = vpop.f32.mrb[0].mxu0
    %124 = vdwg.mxu0
    %v125 = vpack.c.bf16 %v120, %v120
    %v126 = vld [vmem:[%s3] sm:$0xf]
    %v127 = vld [vmem:[%s3 + $0x4] sm:$0xf]
    %v128 = vld [vmem:[%s3 + $0x8] sm:$0xf]
    %v129 = vld [vmem:[%s3 + $0xc] sm:$0xf]
    %v130 = vld [vmem:[%s4] sm:$0x1]
    %v132 = vlaneseq
    %v133 = vshrl.u32 %v132, 7
    %v134 = vsub.s32 0, %v133
    %v135 = vrot.slane %v130, %v134
    %v141 = vunpack.c.l.b16 %v126
    %v142 = vunpack.c.l.b16 %v127
    %v143 = vunpack.c.l.b16 %v128
    %v144 = vunpack.c.l.b16 %v129
    %v145 = vpack.c.b16 %v142, %v141
    %v146 = vpack.c.b16 %v144, %v143
    %vm149 = vcmask 261120
    %v151 = vsel %vm149, %v125, 0
    %153 = vmatprep.subr.bf16.mxu0 0
    %154 = vmatpush1.bf16.msra.mxu0 %v145
    %155 = vmatprep.subr.bf16.mxu0 0
    %156 = vmatpush1.bf16.msra.mxu0 %v146
    %157 = vmatprep.subr.bf16.mxu0 0
    %158 = vmatpush1.bf16.msra.mxu0 0
    %159 = vmatprep.subr.bf16.mxu0 0
    %160 = vmatpush1.bf16.msra.mxu0 0
    %161 = vmatprep.subr.bf16.mxu0 0
    %162 = vmatpush1.bf16.msra.mxu0 0
    %163 = vmatprep.subr.bf16.mxu0 0
    %164 = vmatpush1.bf16.msra.mxu0 0
    %165 = vmatprep.subr.bf16.mxu0 0
    %166 = vmatpush1.bf16.msra.mxu0 0
    %167 = vmatprep.subr.bf16.mxu0 0
    %168 = vmatpush1.bf16.msra.mxu0 0
    %169 = vmatprep.subr.bf16.mxu0 0
    %170 = vmatpush1.bf16.msra.mxu0 0
    %171 = vmatprep.subr.bf16.mxu0 0
    %172 = vmatpush1.bf16.msra.mxu0 0
    %173 = vmatprep.subr.bf16.mxu0 0
    %174 = vmatpush1.bf16.msra.mxu0 0
    %175 = vmatprep.subr.bf16.mxu0 0
    %176 = vmatpush1.bf16.msra.mxu0 0
    %177 = vmatprep.subr.bf16.mxu0 0
    %178 = vmatpush1.bf16.msra.mxu0 0
    %179 = vmatprep.subr.bf16.mxu0 0
    %180 = vmatpush1.bf16.msra.mxu0 0
    %181 = vmatprep.subr.bf16.mxu0 0
    %182 = vmatpush1.bf16.msra.mxu0 0
    %183 = vmatprep.subr.bf16.mxu0 0
    %184 = vmatpush1.bf16.msra.mxu0 0
    %185 = vmatprep.mubr.bf16.mxu0 0
    %186 = vmatmul.mubr.bf16.gmra.mrb[0].mxu0 %v151
    %v187 = vpop.f32.mrb[0].mxu0
    %v188 = vadd.f32 %v135, %v187
    %v189 = vpop.f32.mrb[0].mxu0
    %v190 = vpop.f32.mrb[0].mxu0
    %v191 = vpop.f32.mrb[0].mxu0
    %192 = vdwg.mxu0
    %v193 = vmul.f32 %v188, 0.5
    %v194 = vmul.f32 %v188, 0.70710677
    %v195 = verf.f32.pop %v194
    %v196 = vadd.f32 %v195, 1.0
    %v197 = vmul.f32 %v193, %v196
    %v198 = vpack.c.bf16 %v197, %v197
    %v199 = vld [vmem:[%s5] sm:$0xf]
    %v200 = vld [vmem:[%s5 + $0x4] sm:$0xf]
    %v201 = vld [vmem:[%s5 + $0x8] sm:$0xf]
    %v202 = vld [vmem:[%s5 + $0xc] sm:$0xf]
    %v203 = vld [vmem:[%s5 + $0x10] sm:$0xf]
    %v204 = vld [vmem:[%s5 + $0x14] sm:$0xf]
    %v205 = vld [vmem:[%s5 + $0x18] sm:$0xf]
    %v206 = vld [vmem:[%s5 + $0x1c] sm:$0xf]
    %v207 = vld [vmem:[%s5 + $0x20] sm:$0xf]
    %v208 = vld [vmem:[%s5 + $0x24] sm:$0xf]
    %v209 = vld [vmem:[%s5 + $0x28] sm:$0xf]
    %v210 = vld [vmem:[%s5 + $0x2c] sm:$0xf]
    %v211 = vld [vmem:[%s5 + $0x30] sm:$0xf]
    %v212 = vld [vmem:[%s5 + $0x34] sm:$0xf]
    %v213 = vld [vmem:[%s5 + $0x38] sm:$0xf]
    %v214 = vld [vmem:[%s5 + $0x3c] sm:$0xf]
    %v215 = vld [vmem:[%s6] sm:$0x1]
    %v217 = vlaneseq
    %v218 = vshrl.u32 %v217, 7
    %v219 = vsub.s32 0, %v218
    %v220 = vrot.slane %v215, %v219
    %v238 = vunpack.c.l.b16 %v199
    %v239 = vunpack.c.l.b16 %v200
    %v240 = vunpack.c.l.b16 %v201
    %v241 = vunpack.c.l.b16 %v202
    %v242 = vunpack.c.l.b16 %v203
    %v243 = vunpack.c.l.b16 %v204
    %v244 = vunpack.c.l.b16 %v205
    %v245 = vunpack.c.l.b16 %v206
    %v246 = vunpack.c.l.b16 %v207
    %v247 = vunpack.c.l.b16 %v208
    %v248 = vunpack.c.l.b16 %v209
    %v249 = vunpack.c.l.b16 %v210
    %v250 = vunpack.c.l.b16 %v211
    %v251 = vunpack.c.l.b16 %v212
    %v252 = vunpack.c.l.b16 %v213
    %v253 = vunpack.c.l.b16 %v214
    %v254 = vpack.c.b16 %v239, %v238
    %v255 = vpack.c.b16 %v241, %v240
    %v256 = vpack.c.b16 %v243, %v242
    %v257 = vpack.c.b16 %v245, %v244
    %v258 = vpack.c.b16 %v247, %v246
    %v259 = vpack.c.b16 %v249, %v248
    %v260 = vpack.c.b16 %v251, %v250
    %v261 = vpack.c.b16 %v253, %v252
    %270 = vmatprep.subr.bf16.mxu0 0
    %271 = vmatpush1.bf16.msra.mxu0 %v254
    %272 = vmatprep.subr.bf16.mxu0 0
    %273 = vmatpush1.bf16.msra.mxu0 %v255
    %274 = vmatprep.subr.bf16.mxu0 0
    %275 = vmatpush1.bf16.msra.mxu0 %v256
    %276 = vmatprep.subr.bf16.mxu0 0
    %277 = vmatpush1.bf16.msra.mxu0 %v257
    %278 = vmatprep.subr.bf16.mxu0 0
    %279 = vmatpush1.bf16.msra.mxu0 %v258
    %280 = vmatprep.subr.bf16.mxu0 0
    %281 = vmatpush1.bf16.msra.mxu0 %v259
    %282 = vmatprep.subr.bf16.mxu0 0
    %283 = vmatpush1.bf16.msra.mxu0 %v260
    %284 = vmatprep.subr.bf16.mxu0 0
    %285 = vmatpush1.bf16.msra.mxu0 %v261
    %286 = vmatprep.subr.bf16.mxu0 0
    %287 = vmatpush1.bf16.msra.mxu0 0
    %288 = vmatprep.subr.bf16.mxu0 0
    %289 = vmatpush1.bf16.msra.mxu0 0
    %290 = vmatprep.subr.bf16.mxu0 0
    %291 = vmatpush1.bf16.msra.mxu0 0
    %292 = vmatprep.subr.bf16.mxu0 0
    %293 = vmatpush1.bf16.msra.mxu0 0
    %294 = vmatprep.subr.bf16.mxu0 0
    %295 = vmatpush1.bf16.msra.mxu0 0
    %296 = vmatprep.subr.bf16.mxu0 0
    %297 = vmatpush1.bf16.msra.mxu0 0
    %298 = vmatprep.subr.bf16.mxu0 0
    %299 = vmatpush1.bf16.msra.mxu0 0
    %300 = vmatprep.subr.bf16.mxu0 0
    %301 = vmatpush1.bf16.msra.mxu0 0
    %302 = vmatprep.mubr.bf16.mxu0 0
    %303 = vmatmul.mubr.bf16.gmra.mrb[0].mxu0 %v198
    %v304 = vpop.f32.mrb[0].mxu0
    %v305 = vadd.f32 %v220, %v304
    %v306 = vpop.f32.mrb[0].mxu0
    %v307 = vpop.f32.mrb[0].mxu0
    %v308 = vpop.f32.mrb[0].mxu0
    %309 = vdwg.mxu0
    %v310 = vadd.f32 %v305, %v120
    %v311 = vsel %vm149, %v310, 0.0
    %312 = vadd.xlane.f32.xlu0 %v311
    %v313 = vpop.xlane.xlu0 %312
    %v314 = vrcp.pop 32.0
    %v315 = vmul.f32 %v313, %v314
    %v316 = vsub.f32 %v310, %v315
    %v317 = vmul.f32 %v316, %v316
    %v318 = vsel %vm149, %v317, 0.0
    %319 = vadd.xlane.f32.xlu0 %v318
    %v320 = vpop.xlane.xlu0 %319
    %v321 = vmul.f32 %v320, %v314
    %v322 = vadd.f32 %v321, 1e-12
    %v323 = vrsqrt.pop %v322
    %v324 = vmul.f32 %v316, %v323
    %v325 = vld [vmem:[%s7] sm:$0x1]
    %v327 = vlaneseq
    %v328 = vshrl.u32 %v327, 7
    %v329 = vsub.s32 0, %v328
    %v330 = vrot.slane %v325, %v329
    %v332 = vmul.f32 %v324, %v330
    %v333 = vld [vmem:[%s8] sm:$0x1]
    %v335 = vlaneseq
    %v336 = vshrl.u32 %v335, 7
    %v337 = vsub.s32 0, %v336
    %v338 = vrot.slane %v333, %v337
    %v340 = vadd.f32 %v332, %v338
    %v341 = vpack.c.bf16 %v340, %v340
    %s342 = scalar_lea.vmem %s3, 16
    %v343 = vld [vmem:[%s342] sm:$0xf]
    %v344 = vld [vmem:[%s342 + $0x4] sm:$0xf]
    %v345 = vld [vmem:[%s342 + $0x8] sm:$0xf]
    %v346 = vld [vmem:[%s342 + $0xc] sm:$0xf]
    %s347 = scalar_lea.vmem %s4, 1
    %v348 = vld [vmem:[%s347] sm:$0x1]
    %v350 = vlaneseq
    %v351 = vshrl.u32 %v350, 7
    %v352 = vsub.s32 0, %v351
    %v353 = vrot.slane %v348, %v352
    %v359 = vunpack.c.l.b16 %v343
    %v360 = vunpack.c.l.b16 %v344
    %v361 = vunpack.c.l.b16 %v345
    %v362 = vunpack.c.l.b16 %v346
    %v363 = vpack.c.b16 %v360, %v359
    %v364 = vpack.c.b16 %v362, %v361
    %v368 = vsel %vm149, %v341, 0
    %370 = vmatprep.subr.bf16.mxu0 0
    %371 = vmatpush1.bf16.msra.mxu0 %v363
    %372 = vmatprep.subr.bf16.mxu0 0
    %373 = vmatpush1.bf16.msra.mxu0 %v364
    %374 = vmatprep.subr.bf16.mxu0 0
    %375 = vmatpush1.bf16.msra.mxu0 0
    %376 = vmatprep.subr.bf16.mxu0 0
    %377 = vmatpush1.bf16.msra.mxu0 0
    %378 = vmatprep.subr.bf16.mxu0 0
    %379 = vmatpush1.bf16.msra.mxu0 0
    %380 = vmatprep.subr.bf16.mxu0 0
    %381 = vmatpush1.bf16.msra.mxu0 0
    %382 = vmatprep.subr.bf16.mxu0 0
    %383 = vmatpush1.bf16.msra.mxu0 0
    %384 = vmatprep.subr.bf16.mxu0 0
    %385 = vmatpush1.bf16.msra.mxu0 0
    %386 = vmatprep.subr.bf16.mxu0 0
    %387 = vmatpush1.bf16.msra.mxu0 0
    %388 = vmatprep.subr.bf16.mxu0 0
    %389 = vmatpush1.bf16.msra.mxu0 0
    %390 = vmatprep.subr.bf16.mxu0 0
    %391 = vmatpush1.bf16.msra.mxu0 0
    %392 = vmatprep.subr.bf16.mxu0 0
    %393 = vmatpush1.bf16.msra.mxu0 0
    %394 = vmatprep.subr.bf16.mxu0 0
    %395 = vmatpush1.bf16.msra.mxu0 0
    %396 = vmatprep.subr.bf16.mxu0 0
    %397 = vmatpush1.bf16.msra.mxu0 0
    %398 = vmatprep.subr.bf16.mxu0 0
    %399 = vmatpush1.bf16.msra.mxu0 0
    %400 = vmatprep.subr.bf16.mxu0 0
    %401 = vmatpush1.bf16.msra.mxu0 0
    %402 = vmatprep.mubr.bf16.mxu0 0
    %403 = vmatmul.mubr.bf16.gmra.mrb[0].mxu0 %v368
    %v404 = vpop.f32.mrb[0].mxu0
    %v405 = vadd.f32 %v353, %v404
    %v406 = vpop.f32.mrb[0].mxu0
    %v407 = vpop.f32.mrb[0].mxu0
    %v408 = vpop.f32.mrb[0].mxu0
    %409 = vdwg.mxu0
    %v410 = vmul.f32 %v405, 0.5
    %v411 = vmul.f32 %v405, 0.70710677
    %v412 = verf.f32.pop %v411
    %v413 = vadd.f32 %v412, 1.0
    %v414 = vmul.f32 %v410, %v413
    %v415 = vpack.c.bf16 %v414, %v414
    %s416 = scalar_lea.vmem %s5, 64
    %v417 = vld [vmem:[%s416] sm:$0xf]
    %v418 = vld [vmem:[%s416 + $0x4] sm:$0xf]
    %v419 = vld [vmem:[%s416 + $0x8] sm:$0xf]
    %v420 = vld [vmem:[%s416 + $0xc] sm:$0xf]
    %v421 = vld [vmem:[%s416 + $0x10] sm:$0xf]
    %v422 = vld [vmem:[%s416 + $0x14] sm:$0xf]
    %v423 = vld [vmem:[%s416 + $0x18] sm:$0xf]
    %v424 = vld [vmem:[%s416 + $0x1c] sm:$0xf]
    %v425 = vld [vmem:[%s416 + $0x20] sm:$0xf]
    %v426 = vld [vmem:[%s416 + $0x24] sm:$0xf]
    %v427 = vld [vmem:[%s416 + $0x28] sm:$0xf]
    %v428 = vld [vmem:[%s416 + $0x2c] sm:$0xf]
    %v429 = vld [vmem:[%s416 + $0x30] sm:$0xf]
    %v430 = vld [vmem:[%s416 + $0x34] sm:$0xf]
    %v431 = vld [vmem:[%s416 + $0x38] sm:$0xf]
    %v432 = vld [vmem:[%s416 + $0x3c] sm:$0xf]
    %s433 = scalar_lea.vmem %s6, 1
    %v434 = vld [vmem:[%s433] sm:$0x1]
    %v436 = vlaneseq
    %v437 = vshrl.u32 %v436, 7
    %v438 = vsub.s32 0, %v437
    %v439 = vrot.slane %v434, %v438
    %v457 = vunpack.c.l.b16 %v417
    %v458 = vunpack.c.l.b16 %v418
    %v459 = vunpack.c.l.b16 %v419
    %v460 = vunpack.c.l.b16 %v420
    %v461 = vunpack.c.l.b16 %v421
    %v462 = vunpack.c.l.b16 %v422
    %v463 = vunpack.c.l.b16 %v423
    %v464 = vunpack.c.l.b16 %v424
    %v465 = vunpack.c.l.b16 %v425
    %v466 = vunpack.c.l.b16 %v426
    %v467 = vunpack.c.l.b16 %v427
    %v468 = vunpack.c.l.b16 %v428
    %v469 = vunpack.c.l.b16 %v429
    %v470 = vunpack.c.l.b16 %v430
    %v471 = vunpack.c.l.b16 %v431
    %v472 = vunpack.c.l.b16 %v432
    %v473 = vpack.c.b16 %v458, %v457
    %v474 = vpack.c.b16 %v460, %v459
    %v475 = vpack.c.b16 %v462, %v461
    %v476 = vpack.c.b16 %v464, %v463
    %v477 = vpack.c.b16 %v466, %v465
    %v478 = vpack.c.b16 %v468, %v467
    %v479 = vpack.c.b16 %v470, %v469
    %v480 = vpack.c.b16 %v472, %v471
    %489 = vmatprep.subr.bf16.mxu0 0
    %490 = vmatpush1.bf16.msra.mxu0 %v473
    %491 = vmatprep.subr.bf16.mxu0 0
    %492 = vmatpush1.bf16.msra.mxu0 %v474
    %493 = vmatprep.subr.bf16.mxu0 0
    %494 = vmatpush1.bf16.msra.mxu0 %v475
    %495 = vmatprep.subr.bf16.mxu0 0
    %496 = vmatpush1.bf16.msra.mxu0 %v476
    %497 = vmatprep.subr.bf16.mxu0 0
    %498 = vmatpush1.bf16.msra.mxu0 %v477
    %499 = vmatprep.subr.bf16.mxu0 0
    %500 = vmatpush1.bf16.msra.mxu0 %v478
    %501 = vmatprep.subr.bf16.mxu0 0
    %502 = vmatpush1.bf16.msra.mxu0 %v479
    %503 = vmatprep.subr.bf16.mxu0 0
    %504 = vmatpush1.bf16.msra.mxu0 %v480
    %505 = vmatprep.subr.bf16.mxu0 0
    %506 = vmatpush1.bf16.msra.mxu0 0
    %507 = vmatprep.subr.bf16.mxu0 0
    %508 = vmatpush1.bf16.msra.mxu0 0
    %509 = vmatprep.subr.bf16.mxu0 0
    %510 = vmatpush1.bf16.msra.mxu0 0
    %511 = vmatprep.subr.bf16.mxu0 0
    %512 = vmatpush1.bf16.msra.mxu0 0
    %513 = vmatprep.subr.bf16.mxu0 0
    %514 = vmatpush1.bf16.msra.mxu0 0
    %515 = vmatprep.subr.bf16.mxu0 0
    %516 = vmatpush1.bf16.msra.mxu0 0
    %517 = vmatprep.subr.bf16.mxu0 0
    %518 = vmatpush1.bf16.msra.mxu0 0
    %519 = vmatprep.subr.bf16.mxu0 0
    %520 = vmatpush1.bf16.msra.mxu0 0
    %521 = vmatprep.mubr.bf16.mxu0 0
    %522 = vmatmul.mubr.bf16.gmra.mrb[0].mxu0 %v415
    %v523 = vpop.f32.mrb[0].mxu0
    %v524 = vadd.f32 %v439, %v523
    %v525 = vpop.f32.mrb[0].mxu0
    %v526 = vpop.f32.mrb[0].mxu0
    %v527 = vpop.f32.mrb[0].mxu0
    %528 = vdwg.mxu0
    %v529 = vadd.f32 %v524, %v340
    %v530 = vsel %vm149, %v529, 0.0
    %531 = vadd.xlane.f32.xlu0 %v530
    %v532 = vpop.xlane.xlu0 %531
    %v533 = vmul.f32 %v532, %v314
    %v534 = vsub.f32 %v529, %v533
    %v535 = vmul.f32 %v534, %v534
    %v536 = vsel %vm149, %v535, 0.0
    %537 = vadd.xlane.f32.xlu0 %v536
    %v538 = vpop.xlane.xlu0 %537
    %v539 = vmul.f32 %v538, %v314
    %v540 = vadd.f32 %v539, 1e-12
    %v541 = vrsqrt.pop %v540
    %v542 = vmul.f32 %v534, %v541
    %s543 = scalar_lea.vmem %s7, 1
    %v544 = vld [vmem:[%s543] sm:$0x1]
    %v546 = vlaneseq
    %v547 = vshrl.u32 %v546, 7
    %v548 = vsub.s32 0, %v547
    %v549 = vrot.slane %v544, %v548
    %v551 = vmul.f32 %v542, %v549
    %s552 = scalar_lea.vmem %s8, 1
    %v553 = vld [vmem:[%s552] sm:$0x1]
    %v555 = vlaneseq
    %v556 = vshrl.u32 %v555, 7
    %v557 = vsub.s32 0, %v556
    %v558 = vrot.slane %v553, %v557
    %v560 = vadd.f32 %v551, %v558
    %v561 = vpack.c.bf16 %v560, %v560
    %v562 = vld [vmem:[%s9] sm:$0xf]
    %v563 = vld [vmem:[%s9 + $0x4] sm:$0xf]
    %v564 = vld [vmem:[%s9 + $0x8] sm:$0xf]
    %v565 = vld [vmem:[%s9 + $0xc] sm:$0xf]
    %v566 = vld [vmem:[%s10] sm:$0x1]
    %v568 = vlaneseq
    %v569 = vshrl.u32 %v568, 7
    %v570 = vsub.s32 0, %v569
    %v571 = vrot.slane %v566, %v570
    %v577 = vunpack.c.l.b16 %v562
    %v578 = vunpack.c.l.b16 %v563
    %v579 = vunpack.c.l.b16 %v564
    %v580 = vunpack.c.l.b16 %v565
    %v581 = vpack.c.b16 %v578, %v577
    %v582 = vpack.c.b16 %v580, %v579
    %v586 = vsel %vm149, %v561, 0
    %588 = vmatprep.subr.bf16.mxu0 0
    %589 = vmatpush1.bf16.msra.mxu0 %v581
    %590 = vmatprep.subr.bf16.mxu0 0
    %591 = vmatpush1.bf16.msra.mxu0 %v582
    %592 = vmatprep.subr.bf16.mxu0 0
    %593 = vmatpush1.bf16.msra.mxu0 0
    %594 = vmatprep.subr.bf16.mxu0 0
    %595 = vmatpush1.bf16.msra.mxu0 0
    %596 = vmatprep.subr.bf16.mxu0 0
    %597 = vmatpush1.bf16.msra.mxu0 0
    %598 = vmatprep.subr.bf16.mxu0 0
    %599 = vmatpush1.bf16.msra.mxu0 0
    %600 = vmatprep.subr.bf16.mxu0 0
    %601 = vmatpush1.bf16.msra.mxu0 0
    %602 = vmatprep.subr.bf16.mxu0 0
    %603 = vmatpush1.bf16.msra.mxu0 0
    %604 = vmatprep.subr.bf16.mxu0 0
    %605 = vmatpush1.bf16.msra.mxu0 0
    %606 = vmatprep.subr.bf16.mxu0 0
    %607 = vmatpush1.bf16.msra.mxu0 0
    %608 = vmatprep.subr.bf16.mxu0 0
    %609 = vmatpush1.bf16.msra.mxu0 0
    %610 = vmatprep.subr.bf16.mxu0 0
    %611 = vmatpush1.bf16.msra.mxu0 0
    %612 = vmatprep.subr.bf16.mxu0 0
    %613 = vmatpush1.bf16.msra.mxu0 0
    %614 = vmatprep.subr.bf16.mxu0 0
    %615 = vmatpush1.bf16.msra.mxu0 0
    %616 = vmatprep.subr.bf16.mxu0 0
    %617 = vmatpush1.bf16.msra.mxu0 0
    %618 = vmatprep.subr.bf16.mxu0 0
    %619 = vmatpush1.bf16.msra.mxu0 0
    %620 = vmatprep.mubr.bf16.mxu0 0
    %621 = vmatmul.mubr.bf16.gmra.mrb[0].mxu0 %v586
    %v622 = vpop.f32.mrb[0].mxu0
    %v623 = vadd.f32 %v571, %v622
    %v624 = vpop.f32.mrb[0].mxu0
    %v625 = vpop.f32.mrb[0].mxu0
    %v626 = vpop.f32.mrb[0].mxu0
    %627 = vdwg.mxu0
    %628 = vst [vmem:[#allocation2] sm:$0xff] %v623
    // Predicated region
    $region46: #{tpu_custom_call.1} parent=1 // pred_check
      _
    $region47: #{tpu_custom_call.1} parent=1 // pred_check_branch
      %630 = sbr.rel (0) target = $region49
    $region48: #{tpu_custom_call.1} parent=1 // pred_region
      %s632 = ssub.s32 128, 128
      %633 = vsyncadd [#allocation3], %s632
      %s635 = sshll.u32 [#allocation2], 4
      %s636 = int_to_ptr.vmem [resolvable:$true] %s635
      %638 = dma.vmem_to_hbm [thread:$0]  %s636, 128, %s11, [#allocation3]
    $region49: #{tpu_custom_call.1} parent=1 // pred_fallthru
      _
    // Predicated region
    $region50: #{tpu_custom_call.1} parent=1 // pred_check
      _
    $region51: #{tpu_custom_call.1} parent=1 // pred_check_branch
      %640 = sbr.rel (0) target = $region53
    $region52: #{tpu_custom_call.1} parent=1 // pred_region
      %641 = dma.done [#allocation3], 128
    $region53: #{tpu_custom_call.1} parent=1 // pred_fallthru
      _
    %642 = vsyncpa [#allocation3], 1

</llo_original>
